<compile_context>
chip_gen: v7x
topology: tpu7x:2x2x1
jax: 0.10.0
libtpu: 0.0.40
codegen_flags: <defaults>
</compile_context>

<pallas_src>
import functools

import jax
import jax.numpy as jnp
from jax.experimental import pallas as pl
from jax.experimental.pallas import tpu as pltpu

HIDDEN = 128


def _round_up(x, m):
    return ((x + m - 1) // m) * m


def _elementwise_dtype():
    """bf16 elementwise on chips with a bf16 VPU (v6e/v7x); f32 on v5e & older."""
    try:
        kind = jax.devices()[0].device_kind.lower()
    except Exception:
        return jnp.float32
    if any(tag in kind for tag in ("v2", "v3", "v4", "v5")):
        return jnp.float32
    return jnp.bfloat16


def critic_kernel(x_ref, w1_ref, b1_ref, w2_ref, b2_ref, w3_ref, b3_ref, o_ref,
                  *, ew_dtype):
    # fc1 + relu: bf16 MXU matmul, f32 accumulate, then bias+ReLU in ew_dtype
    # (bf16 halves VALU work + ld/st bytes on v6e/v7x; f32 on v5e).
    x_bf = x_ref[...].astype(jnp.bfloat16)
    h1 = jnp.dot(x_bf, w1_ref[...], preferred_element_type=jnp.float32)
    h1 = jnp.maximum(h1.astype(ew_dtype) + b1_ref[...], 0.0).astype(jnp.bfloat16)

    # fc2 + relu.
    h2 = jnp.dot(h1, w2_ref[...], preferred_element_type=jnp.float32)
    h2 = jnp.maximum(h2.astype(ew_dtype) + b2_ref[...], 0.0).astype(jnp.bfloat16)

    # fc3 head: (1,128) x (tm,128)^T contraction -> lane-dense (1, tm) row, so
    # writeback is unmasked 128-lane stores instead of tm/8 masked (tm,1) ones.
    row = jax.lax.dot_general(
        w3_ref[...], h2,
        dimension_numbers=(((1,), (1,)), ((), ())),
        preferred_element_type=jnp.float32)
    o_ref[...] = (row + b3_ref[...]).reshape(o_ref.shape).astype(o_ref.dtype)


@functools.partial(jax.jit, static_argnames=("block_rows",))
def critic_forward(x, params, *, block_rows=4096):
    """x: (B, state_size) float32. Returns (B, 1) float32 = fc3(relu(fc2(relu(fc1(x)))))."""
    B, S = x.shape
    ew_dtype = _elementwise_dtype()

    # bf16 weights for the MXU; biases in the elementwise dtype (tiny arrays,
    # the wrapper-side cast is negligible); b3 is added post-matmul in f32.
    w1 = params["w1"].astype(jnp.bfloat16)
    w2 = params["w2"].astype(jnp.bfloat16)
    w3 = params["w3"].astype(jnp.bfloat16)            # (1, HIDDEN)
    b1 = params["b1"].astype(ew_dtype)
    b2 = params["b2"].astype(ew_dtype)
    b3 = params["b3"]                                  # (1, 1) f32

    # Batch tile: big tiles amortize per-step overhead.  For B >= 256 split
    # into >= 2 blocks so both v7x TensorCores get work.  No jnp.pad(x): the
    # ragged last block's input DMA is clamped by Pallas and its garbage rows
    # land only in the sliced-off tail of the (tiny) output.
    if B < 256:
        tm = B                                         # single exact block
    else:
        tm = min(_round_up(block_rows, 8), _round_up(pl.cdiv(B, 2), 8))
    n_blocks = pl.cdiv(B, tm)

    resident = lambda a: pl.BlockSpec(a.shape, lambda i: (0,) * a.ndim)

    out = pl.pallas_call(
        functools.partial(critic_kernel, ew_dtype=ew_dtype),
        out_shape=jax.ShapeDtypeStruct((n_blocks, 1, tm), jnp.float32),
        grid=(n_blocks,),
        in_specs=[
            pl.BlockSpec((tm, S), lambda i: (i, 0)),   # streamed x tile
            resident(w1), resident(b1),                # weights stay in VMEM
            resident(w2), resident(b2),
            resident(w3), resident(b3),
        ],
        out_specs=pl.BlockSpec((1, 1, tm), lambda i: (i, 0, 0)),
        compiler_params=pltpu.CompilerParams(
            dimension_semantics=("parallel",)),        # megacore on v7x
    )(x, w1, b1, w2, b2, w3, b3)

    out = out.reshape(n_blocks * tm)                   # contiguous, free
    if n_blocks * tm != B:
        out = out[:B]                                  # tiny 4B/row slice
    return out.reshape(B, 1)


def critic_reference(x, params, ew_dtype):
    """Pure-JAX reference with the same bf16-MXU / ew_dtype-elementwise math."""
    w1 = params["w1"].astype(jnp.bfloat16)
    w2 = params["w2"].astype(jnp.bfloat16)
    w3 = params["w3"].astype(jnp.bfloat16)
    h1 = jnp.dot(x.astype(jnp.bfloat16), w1, preferred_element_type=jnp.float32)
    h1 = jnp.maximum(h1.astype(ew_dtype) + params["b1"].astype(ew_dtype), 0.0)
    h2 = jnp.dot(h1.astype(jnp.bfloat16), w2, preferred_element_type=jnp.float32)
    h2 = jnp.maximum(h2.astype(ew_dtype) + params["b2"].astype(ew_dtype), 0.0)
    out = jnp.dot(h2.astype(jnp.bfloat16), w3.T, preferred_element_type=jnp.float32)
    return out + params["b3"]


def init_params(key, state_size, hidden=HIDDEN):
    # Mimics nn.Linear's uniform(-1/sqrt(fan_in), 1/sqrt(fan_in)) init.
    k = jax.random.split(key, 6)

    def lin(kw, kb, fan_in, fan_out):
        bound = 1.0 / jnp.sqrt(fan_in)
        w = jax.random.uniform(kw, (fan_in, fan_out), jnp.float32, -bound, bound)
        b = jax.random.uniform(kb, (1, fan_out), jnp.float32, -bound, bound)
        return w, b

    w1, b1 = lin(k[0], k[1], state_size, hidden)
    w2, b2 = lin(k[2], k[3], hidden, hidden)
    w3t, b3 = lin(k[4], k[5], hidden, 1)
    # Store w3 lane-dense as (1, hidden) for the in-kernel (1,tm) head matmul.
    return {"w1": w1, "b1": b1, "w2": w2, "b2": b2,
            "w3": w3t.reshape(1, hidden), "b3": b3}


if __name__ == "__main__":
    key = jax.random.PRNGKey(0)
    kx, kx2, kp = jax.random.split(key, 3)

    state_size = 8     # env.observation_space.shape[0] stand-in
    params = init_params(kp, state_size)
    ew_dtype = _elementwise_dtype()

    # Small single-block case (typical RL mini-batch).
    x_small = jax.random.normal(kx, (8, state_size), dtype=jnp.float32)
    out_small = jax.block_until_ready(critic_forward(x_small, params))
    assert out_small.shape == (8, 1)
    ref_small = critic_reference(x_small, params, ew_dtype)
    assert jnp.allclose(out_small, ref_small, atol=1e-2, rtol=1e-2), (
        f"max abs err {jnp.max(jnp.abs(out_small - ref_small))}")

    # Multi-block ragged case (exercises the 2-block split + tail slicing).
    x_big = jax.random.normal(kx2, (300, state_size), dtype=jnp.float32)
    out_big = jax.block_until_ready(critic_forward(x_big, params))
    assert out_big.shape == (300, 1)
    ref_big = critic_reference(x_big, params, ew_dtype)
    assert jnp.allclose(out_big, ref_big, atol=1e-2, rtol=1e-2), (
        f"max abs err {jnp.max(jnp.abs(out_big - ref_big))}")

    print("KERNEL_OK")
</pallas_src>

<mosaic_0001>
module attributes {stable_mosaic.version = 11 : i64} {
  func.func @critic_kernel(%arg0: i32, %arg1: memref<8x8xf32, #tpu.memory_space<vmem>>, %arg2: memref<8x128xbf16, #tpu.memory_space<vmem>>, %arg3: memref<1x128xbf16, #tpu.memory_space<vmem>>, %arg4: memref<128x128xbf16, #tpu.memory_space<vmem>>, %arg5: memref<1x128xbf16, #tpu.memory_space<vmem>>, %arg6: memref<1x128xbf16, #tpu.memory_space<vmem>>, %arg7: memref<1x1xf32, #tpu.memory_space<vmem>>, %arg8: memref<1x1x8xf32, #tpu.memory_space<vmem>>) attributes {dimension_semantics = [#tpu.dimension_semantics<parallel>], iteration_bounds = array<i64: 1>, scalar_prefetch = 0 : i64, scratch_operands = 0 : i64, tpu.core_type = #tpu.core_type<tc>, window_params = [{transform_indices = @transform_0, window_bounds = array<i64: 8, 8>}, {pipeline_mode = #tpu.pipeline_mode<synchronous>, transform_indices = @transform_1, window_bounds = array<i64: 8, 128>}, {pipeline_mode = #tpu.pipeline_mode<synchronous>, transform_indices = @transform_2, window_bounds = array<i64: 1, 128>}, {pipeline_mode = #tpu.pipeline_mode<synchronous>, transform_indices = @transform_3, window_bounds = array<i64: 128, 128>}, {pipeline_mode = #tpu.pipeline_mode<synchronous>, transform_indices = @transform_4, window_bounds = array<i64: 1, 128>}, {pipeline_mode = #tpu.pipeline_mode<synchronous>, transform_indices = @transform_5, window_bounds = array<i64: 1, 128>}, {pipeline_mode = #tpu.pipeline_mode<synchronous>, transform_indices = @transform_6, window_bounds = array<i64: 1, 1>}, {transform_indices = @transform_7, window_bounds = array<i64: 1, 1, 8>}]} {
    %c0 = arith.constant 0 : index
    %c0_0 = arith.constant 0 : index
    %0 = vector.load %arg1[%c0, %c0_0] : memref<8x8xf32, #tpu.memory_space<vmem>>, vector<8x8xf32>
    %1 = arith.truncf %0 : vector<8x8xf32> to vector<8x8xbf16>
    %c0_1 = arith.constant 0 : index
    %c0_2 = arith.constant 0 : index
    %2 = vector.load %arg2[%c0_1, %c0_2] : memref<8x128xbf16, #tpu.memory_space<vmem>>, vector<8x128xbf16>
    %cst = arith.constant dense<0.000000e+00> : vector<8x128xf32>
    %3 = tpu.matmul %1, %2, %cst {dimension_numbers = #tpu.dot_dimension_numbers<[1], [0], [0], [1], [0, 0, 1, 1], [], []>} : vector<8x8xbf16>, vector<8x128xbf16>, vector<8x128xf32> -> vector<8x128xf32>
    %4 = arith.truncf %3 : vector<8x128xf32> to vector<8x128xbf16>
    %c0_3 = arith.constant 0 : index
    %c0_4 = arith.constant 0 : index
    %5 = vector.load %arg3[%c0_3, %c0_4] : memref<1x128xbf16, #tpu.memory_space<vmem>>, vector<1x128xbf16>
    %6 = vector.broadcast %5 : vector<1x128xbf16> to vector<8x128xbf16>
    %7 = arith.addf %4, %6 : vector<8x128xbf16>
    %cst_5 = arith.constant 0.000000e+00 : bf16
    %8 = vector.broadcast %cst_5 : bf16 to vector<8x128xbf16>
    %9 = arith.maximumf %7, %8 : vector<8x128xbf16>
    %c0_6 = arith.constant 0 : index
    %c0_7 = arith.constant 0 : index
    %10 = vector.load %arg4[%c0_6, %c0_7] : memref<128x128xbf16, #tpu.memory_space<vmem>>, vector<128x128xbf16>
    %cst_8 = arith.constant dense<0.000000e+00> : vector<8x128xf32>
    %11 = tpu.matmul %9, %10, %cst_8 {dimension_numbers = #tpu.dot_dimension_numbers<[1], [0], [0], [1], [0, 0, 1, 1], [], []>} : vector<8x128xbf16>, vector<128x128xbf16>, vector<8x128xf32> -> vector<8x128xf32>
    %12 = arith.truncf %11 : vector<8x128xf32> to vector<8x128xbf16>
    %c0_9 = arith.constant 0 : index
    %c0_10 = arith.constant 0 : index
    %13 = vector.load %arg5[%c0_9, %c0_10] : memref<1x128xbf16, #tpu.memory_space<vmem>>, vector<1x128xbf16>
    %14 = vector.broadcast %13 : vector<1x128xbf16> to vector<8x128xbf16>
    %15 = arith.addf %12, %14 : vector<8x128xbf16>
    %cst_11 = arith.constant 0.000000e+00 : bf16
    %16 = vector.broadcast %cst_11 : bf16 to vector<8x128xbf16>
    %17 = arith.maximumf %15, %16 : vector<8x128xbf16>
    %c0_12 = arith.constant 0 : index
    %c0_13 = arith.constant 0 : index
    %18 = vector.load %arg6[%c0_12, %c0_13] : memref<1x128xbf16, #tpu.memory_space<vmem>>, vector<1x128xbf16>
    %cst_14 = arith.constant dense<0.000000e+00> : vector<1x8xf32>
    %19 = tpu.matmul %18, %17, %cst_14 {dimension_numbers = #tpu.dot_dimension_numbers<[1], [1], [0], [0], [0, 0, 1, 0], [], []>} : vector<1x128xbf16>, vector<8x128xbf16>, vector<1x8xf32> -> vector<1x8xf32>
    %c0_15 = arith.constant 0 : index
    %c0_16 = arith.constant 0 : index
    %20 = vector.load %arg7[%c0_15, %c0_16] : memref<1x1xf32, #tpu.memory_space<vmem>>, vector<1x1xf32>
    %21 = vector.broadcast %20 : vector<1x1xf32> to vector<1x8xf32>
    %22 = arith.addf %19, %21 : vector<1x8xf32>
    %23 = vector.shape_cast %22 : vector<1x8xf32> to vector<1x1x8xf32>
    %c0_17 = arith.constant 0 : index
    %c0_18 = arith.constant 0 : index
    %c0_19 = arith.constant 0 : index
    %24 = vector.load %arg8[%c0_17, %c0_18, %c0_19] : memref<1x1x8xf32, #tpu.memory_space<vmem>>, vector<1x1x8xf32>
    tpu.vector_store %arg8[%c0_17, %c0_18, %c0_19], %23 {strides = array<i32>} : memref<1x1x8xf32, #tpu.memory_space<vmem>>, vector<1x1x8xf32>,
    return
  }
  func.func @transform_0(%arg0: i32) -> (i32, i32) {
    %c0_i32 = arith.constant 0 : i32
    %c0_i32_0 = arith.constant 0 : i32
    return %arg0, %c0_i32 : i32, i32
  }
  func.func @transform_1(%arg0: i32) -> (i32, i32) {
    %c0_i32 = arith.constant 0 : i32
    %c0_i32_0 = arith.constant 0 : i32
    %c0_i32_1 = arith.constant 0 : i32
    return %c0_i32, %c0_i32_0 : i32, i32
  }
  func.func @transform_2(%arg0: i32) -> (i32, i32) {
    %c0_i32 = arith.constant 0 : i32
    %c0_i32_0 = arith.constant 0 : i32
    %c0_i32_1 = arith.constant 0 : i32
    return %c0_i32, %c0_i32_0 : i32, i32
  }
  func.func @transform_3(%arg0: i32) -> (i32, i32) {
    %c0_i32 = arith.constant 0 : i32
    %c0_i32_0 = arith.constant 0 : i32
    %c0_i32_1 = arith.constant 0 : i32
    return %c0_i32, %c0_i32_0 : i32, i32
  }
  func.func @transform_4(%arg0: i32) -> (i32, i32) {
    %c0_i32 = arith.constant 0 : i32
    %c0_i32_0 = arith.constant 0 : i32
    %c0_i32_1 = arith.constant 0 : i32
    return %c0_i32, %c0_i32_0 : i32, i32
  }
  func.func @transform_5(%arg0: i32) -> (i32, i32) {
    %c0_i32 = arith.constant 0 : i32
    %c0_i32_0 = arith.constant 0 : i32
    %c0_i32_1 = arith.constant 0 : i32
    return %c0_i32, %c0_i32_0 : i32, i32
  }
  func.func @transform_6(%arg0: i32) -> (i32, i32) {
    %c0_i32 = arith.constant 0 : i32
    %c0_i32_0 = arith.constant 0 : i32
    %c0_i32_1 = arith.constant 0 : i32
    return %c0_i32, %c0_i32_0 : i32, i32
  }
  func.func @transform_7(%arg0: i32) -> (i32, i32, i32) {
    %c0_i32 = arith.constant 0 : i32
    %c0_i32_0 = arith.constant 0 : i32
    %c0_i32_1 = arith.constant 0 : i32
    return %arg0, %c0_i32, %c0_i32_0 : i32, i32, i32
  }
}

</mosaic_0001>

<llo_original>
// kernel: critic_forward.1
$region0: #{critic_forward.1}
  #allocation0 [shape = 'u32[]', space=smem, size = 0x4, offset = 0x4, fixed_abs, tag = 'smem constant byte address 0x4 - core index']
  #allocation1 [shape = 'u32[144,128]{1,0:T(1,128)}', space=vmem, size = 0x12000, scoped, tag = 'internal scratch']
  #allocation2 [shape = 'f32[1,1]{1,0:T(1,128)S(1)}', space=vmem, size = 0x200, scoped, tag = 'scoped memory for critic_forward.1']
  %s0 = inlined_call_operand.vmem [shape: f32[8,8], index: 0, kind: input, shape index: {}]
  %s1 = inlined_call_operand.vmem [shape: bf16[8,128], index: 1, kind: input, shape index: {}]
  %s2 = inlined_call_operand.vmem [shape: bf16[1,128], index: 2, kind: input, shape index: {}]
  %s3 = inlined_call_operand.vmem [shape: bf16[128,128], index: 3, kind: input, shape index: {}]
  %s4 = inlined_call_operand.vmem [shape: bf16[1,128], index: 4, kind: input, shape index: {}]
  %s5 = inlined_call_operand.vmem [shape: bf16[1,128], index: 5, kind: input, shape index: {}]
  %s6 = inlined_call_operand.<no memory space> [shape: f32[1,1], index: 6, kind: input, shape index: {}]
  %s7 = inlined_call_operand.hbm [shape: f32[1,1,8], index: 7, kind: output, shape index: {}]
  %s8 = sld [smem:[#allocation0]]
  $region38: #{critic_forward.1} parent=0
    _
  %s10 = ssub.s32 1, %s8
  %s11 = scalar_select 0, %s10, %s8
  %v12 = vstv %s6
  %13 = vst [vmem:[#allocation2] sm:$0x1] %v12
  $region1: #{critic_forward.1} parent=0
    #allocation3 [shape = 'u8[512]{0}', space=vmem, size = 0x400, scoped, tag = 'output window, operand 0, single buffered']
    #allocation4 [shape = 's32[1]{0}', space=sflag, size = 0x4, scoped, tag = 'scoped memory for critic_forward.1']
    %14 = vsyncpa [#allocation4], 0
    // Predicated region
    $region2: #{critic_forward.1} parent=1 // pred_check
      _
    $region3: #{critic_forward.1} parent=1 // pred_check_branch
      %16 = sbr.rel (0) target = $region5
    $region4: #{critic_forward.1} parent=1 // pred_region
      _
    $region5: #{critic_forward.1} parent=1 // pred_fallthru
      _
    // Predicated region
    $region6: #{critic_forward.1} parent=1 // pred_check
      _
    $region7: #{critic_forward.1} parent=1 // pred_check_branch
      %18 = sbr.rel (0) target = $region9
    $region8: #{critic_forward.1} parent=1 // pred_region
      _
    $region9: #{critic_forward.1} parent=1 // pred_fallthru
      _
    // Predicated region
    $region10: #{critic_forward.1} parent=1 // pred_check
      _
    $region11: #{critic_forward.1} parent=1 // pred_check_branch
      %20 = sbr.rel (0) target = $region13
    $region12: #{critic_forward.1} parent=1 // pred_region
      _
    $region13: #{critic_forward.1} parent=1 // pred_fallthru
      _
    // Predicated region
    $region14: #{critic_forward.1} parent=1 // pred_check
      _
    $region15: #{critic_forward.1} parent=1 // pred_check_branch
      %22 = sbr.rel (0) target = $region17
    $region16: #{critic_forward.1} parent=1 // pred_region
      _
    $region17: #{critic_forward.1} parent=1 // pred_fallthru
      _
    // Predicated region
    $region18: #{critic_forward.1} parent=1 // pred_check
      _
    $region19: #{critic_forward.1} parent=1 // pred_check_branch
      %24 = sbr.rel (0) target = $region21
    $region20: #{critic_forward.1} parent=1 // pred_region
      _
    $region21: #{critic_forward.1} parent=1 // pred_fallthru
      _
    // Predicated region
    $region22: #{critic_forward.1} parent=1 // pred_check
      _
    $region23: #{critic_forward.1} parent=1 // pred_check_branch
      %26 = sbr.rel (0) target = $region25
    $region24: #{critic_forward.1} parent=1 // pred_region
      _
    $region25: #{critic_forward.1} parent=1 // pred_fallthru
      _
    // Predicated region
    $region26: #{critic_forward.1} parent=1 // pred_check
      _
    $region27: #{critic_forward.1} parent=1 // pred_check_branch
      %28 = sbr.rel (0) target = $region29
    $region28: #{critic_forward.1} parent=1 // pred_region
      _
    $region29: #{critic_forward.1} parent=1 // pred_fallthru
      _
    %v30 = vld [vmem:[%s0] sm:$0xff]
    %v31 = vpack.c.bf16 %v30, %v30
    %v32 = vld [vmem:[%s1] sm:$0xf]
    %vm33 = vcmask 64512
    %v35 = vsel %vm33, %v31, 0
    %vm37 = vcmask 1043456
    %v39 = vsel %vm37, %v32, 0
    %41 = vmatprep.subr.bf16.mxu0 0
    %42 = vmatpush1.bf16.msra.mxu0 %v39
    %43 = vmatprep.subr.bf16.mxu0 0
    %44 = vmatpush1.bf16.msra.mxu0 0
    %45 = vmatprep.subr.bf16.mxu0 0
    %46 = vmatpush1.bf16.msra.mxu0 0
    %47 = vmatprep.subr.bf16.mxu0 0
    %48 = vmatpush1.bf16.msra.mxu0 0
    %49 = vmatprep.subr.bf16.mxu0 0
    %50 = vmatpush1.bf16.msra.mxu0 0
    %51 = vmatprep.subr.bf16.mxu0 0
    %52 = vmatpush1.bf16.msra.mxu0 0
    %53 = vmatprep.subr.bf16.mxu0 0
    %54 = vmatpush1.bf16.msra.mxu0 0
    %55 = vmatprep.subr.bf16.mxu0 0
    %56 = vmatpush1.bf16.msra.mxu0 0
    %57 = vmatprep.subr.bf16.mxu0 0
    %58 = vmatpush1.bf16.msra.mxu0 0
    %59 = vmatprep.subr.bf16.mxu0 0
    %60 = vmatpush1.bf16.msra.mxu0 0
    %61 = vmatprep.subr.bf16.mxu0 0
    %62 = vmatpush1.bf16.msra.mxu0 0
    %63 = vmatprep.subr.bf16.mxu0 0
    %64 = vmatpush1.bf16.msra.mxu0 0
    %65 = vmatprep.subr.bf16.mxu0 0
    %66 = vmatpush1.bf16.msra.mxu0 0
    %67 = vmatprep.subr.bf16.mxu0 0
    %68 = vmatpush1.bf16.msra.mxu0 0
    %69 = vmatprep.subr.bf16.mxu0 0
    %70 = vmatpush1.bf16.msra.mxu0 0
    %71 = vmatprep.subr.bf16.mxu0 0
    %72 = vmatpush1.bf16.msra.mxu0 0
    %73 = vmatprep.mubr.bf16.mxu0 0
    %74 = vmatmul.mubr.bf16.gmra.mrb[0].mxu0 %v35
    %v75 = vpop.f32.mrb[0].mxu0
    %v76 = vadd.f32 0.0, %v75
    %v77 = vpop.f32.mrb[0].mxu0
    %v78 = vpop.f32.mrb[0].mxu0
    %v79 = vpop.f32.mrb[0].mxu0
    %80 = vdwg.mxu0
    %v81 = vpack.c.bf16 %v76, %v76
    %v82 = vld [vmem:[%s2] sm:$0x1]
    %v84 = vpack.i.b16 %v82, %v82
    %v86 = vlaneseq
    %v87 = vshrl.u32 %v86, 7
    %v88 = vsub.s32 0, %v87
    %v89 = vrot.slane %v84, %v88
    %v90 = vadd.bf16 %v81, %v89
    %v91 = vmax.bf16 %v90, 0
    %v92 = vld [vmem:[%s3] sm:$0xf]
    %v93 = vld [vmem:[%s3 + $0x4] sm:$0xf]
    %v94 = vld [vmem:[%s3 + $0x8] sm:$0xf]
    %v95 = vld [vmem:[%s3 + $0xc] sm:$0xf]
    %v96 = vld [vmem:[%s3 + $0x10] sm:$0xf]
    %v97 = vld [vmem:[%s3 + $0x14] sm:$0xf]
    %v98 = vld [vmem:[%s3 + $0x18] sm:$0xf]
    %v99 = vld [vmem:[%s3 + $0x1c] sm:$0xf]
    %v100 = vld [vmem:[%s3 + $0x20] sm:$0xf]
    %v101 = vld [vmem:[%s3 + $0x24] sm:$0xf]
    %v102 = vld [vmem:[%s3 + $0x28] sm:$0xf]
    %v103 = vld [vmem:[%s3 + $0x2c] sm:$0xf]
    %v104 = vld [vmem:[%s3 + $0x30] sm:$0xf]
    %v105 = vld [vmem:[%s3 + $0x34] sm:$0xf]
    %v106 = vld [vmem:[%s3 + $0x38] sm:$0xf]
    %v107 = vld [vmem:[%s3 + $0x3c] sm:$0xf]
    %v124 = vunpack.c.l.b16 %v92
    %v125 = vunpack.c.l.b16 %v93
    %v126 = vunpack.c.l.b16 %v94
    %v127 = vunpack.c.l.b16 %v95
    %v128 = vunpack.c.l.b16 %v96
    %v129 = vunpack.c.l.b16 %v97
    %v130 = vunpack.c.l.b16 %v98
    %v131 = vunpack.c.l.b16 %v99
    %v132 = vunpack.c.l.b16 %v100
    %v133 = vunpack.c.l.b16 %v101
    %v134 = vunpack.c.l.b16 %v102
    %v135 = vunpack.c.l.b16 %v103
    %v136 = vunpack.c.l.b16 %v104
    %v137 = vunpack.c.l.b16 %v105
    %v138 = vunpack.c.l.b16 %v106
    %v139 = vunpack.c.l.b16 %v107
    %v140 = vpack.c.b16 %v125, %v124
    %v141 = vpack.c.b16 %v127, %v126
    %v142 = vpack.c.b16 %v129, %v128
    %v143 = vpack.c.b16 %v131, %v130
    %v144 = vpack.c.b16 %v133, %v132
    %v145 = vpack.c.b16 %v135, %v134
    %v146 = vpack.c.b16 %v137, %v136
    %v147 = vpack.c.b16 %v139, %v138
    %156 = vmatprep.subr.bf16.mxu0 0
    %157 = vmatpush1.bf16.msra.mxu0 %v140
    %158 = vmatprep.subr.bf16.mxu0 0
    %159 = vmatpush1.bf16.msra.mxu0 %v141
    %160 = vmatprep.subr.bf16.mxu0 0
    %161 = vmatpush1.bf16.msra.mxu0 %v142
    %162 = vmatprep.subr.bf16.mxu0 0
    %163 = vmatpush1.bf16.msra.mxu0 %v143
    %164 = vmatprep.subr.bf16.mxu0 0
    %165 = vmatpush1.bf16.msra.mxu0 %v144
    %166 = vmatprep.subr.bf16.mxu0 0
    %167 = vmatpush1.bf16.msra.mxu0 %v145
    %168 = vmatprep.subr.bf16.mxu0 0
    %169 = vmatpush1.bf16.msra.mxu0 %v146
    %170 = vmatprep.subr.bf16.mxu0 0
    %171 = vmatpush1.bf16.msra.mxu0 %v147
    %172 = vmatprep.subr.bf16.mxu0 0
    %173 = vmatpush1.bf16.msra.mxu0 0
    %174 = vmatprep.subr.bf16.mxu0 0
    %175 = vmatpush1.bf16.msra.mxu0 0
    %176 = vmatprep.subr.bf16.mxu0 0
    %177 = vmatpush1.bf16.msra.mxu0 0
    %178 = vmatprep.subr.bf16.mxu0 0
    %179 = vmatpush1.bf16.msra.mxu0 0
    %180 = vmatprep.subr.bf16.mxu0 0
    %181 = vmatpush1.bf16.msra.mxu0 0
    %182 = vmatprep.subr.bf16.mxu0 0
    %183 = vmatpush1.bf16.msra.mxu0 0
    %184 = vmatprep.subr.bf16.mxu0 0
    %185 = vmatpush1.bf16.msra.mxu0 0
    %186 = vmatprep.subr.bf16.mxu0 0
    %187 = vmatpush1.bf16.msra.mxu0 0
    %188 = vmatprep.mubr.bf16.mxu0 0
    %189 = vmatmul.mubr.bf16.gmra.mrb[0].mxu0 %v91
    %v190 = vpop.f32.mrb[0].mxu0
    %v191 = vadd.f32 0.0, %v190
    %v192 = vpop.f32.mrb[0].mxu0
    %v193 = vpop.f32.mrb[0].mxu0
    %v194 = vpop.f32.mrb[0].mxu0
    %195 = vdwg.mxu0
    %v196 = vpack.c.bf16 %v191, %v191
    %v197 = vld [vmem:[%s4] sm:$0x1]
    %v199 = vpack.i.b16 %v197, %v197
    %v201 = vlaneseq
    %v202 = vshrl.u32 %v201, 7
    %v203 = vsub.s32 0, %v202
    %v204 = vrot.slane %v199, %v203
    %v205 = vadd.bf16 %v196, %v204
    %v206 = vmax.bf16 %v205, 0
    %v207 = vld [vmem:[%s5] sm:$0x1]
    %v208 = vld [vmem:[#allocation2] sm:$0x1]
    %210 = vset.pattern.permute.xlu0 0
    %211 = vperm.xlu0 %210, %v208
    %v212 = vpop.permute.xlu0 %211
    %v214 = vlaneseq
    %v215 = vshrl.u32 %v214, 7
    %v216 = vsub.s32 0, %v215
    %v217 = vrot.slane %v212, %v216
    %218 = vmatprep.subr.bf16.mxu0 0
    %219 = vmatpush1.bf16.xpose.msra.mxu0 %v206
    %220 = vmatprep.subr.bf16.mxu0 0
    %221 = vmatpush1.bf16.xpose.msra.mxu0 0
    %222 = vmatprep.subr.bf16.mxu0 0
    %223 = vmatpush1.bf16.xpose.msra.mxu0 0
    %224 = vmatprep.subr.bf16.mxu0 0
    %225 = vmatpush1.bf16.xpose.msra.mxu0 0
    %226 = vmatprep.subr.bf16.mxu0 0
    %227 = vmatpush1.bf16.xpose.msra.mxu0 0
    %228 = vmatprep.subr.bf16.mxu0 0
    %229 = vmatpush1.bf16.xpose.msra.mxu0 0
    %230 = vmatprep.subr.bf16.mxu0 0
    %231 = vmatpush1.bf16.xpose.msra.mxu0 0
    %232 = vmatprep.subr.bf16.mxu0 0
    %233 = vmatpush1.bf16.xpose.msra.mxu0 0
    %234 = vmatprep.subr.bf16.mxu0 0
    %235 = vmatpush1.bf16.xpose.msra.mxu0 0
    %236 = vmatprep.subr.bf16.mxu0 0
    %237 = vmatpush1.bf16.xpose.msra.mxu0 0
    %238 = vmatprep.subr.bf16.mxu0 0
    %239 = vmatpush1.bf16.xpose.msra.mxu0 0
    %240 = vmatprep.subr.bf16.mxu0 0
    %241 = vmatpush1.bf16.xpose.msra.mxu0 0
    %242 = vmatprep.subr.bf16.mxu0 0
    %243 = vmatpush1.bf16.xpose.msra.mxu0 0
    %244 = vmatprep.subr.bf16.mxu0 0
    %245 = vmatpush1.bf16.xpose.msra.mxu0 0
    %246 = vmatprep.subr.bf16.mxu0 0
    %247 = vmatpush1.bf16.xpose.msra.mxu0 0
    %248 = vmatprep.subr.bf16.mxu0 0
    %249 = vmatpush1.bf16.xpose.msra.mxu0 0
    %250 = vmatprep.mubr.bf16.mxu0 0
    %251 = vmatmul.mubr.bf16.gmra.mrb[0].mxu0 %v207
    %v252 = vpop.f32.mrb[0].mxu0
    %v253 = vadd.f32 %v217, %v252
    %v254 = vpop.f32.mrb[0].mxu0
    %v255 = vpop.f32.mrb[0].mxu0
    %v256 = vpop.f32.mrb[0].mxu0
    %257 = vdwg.mxu0
    %vm258 = vcmask 57344
    %259 = vst.msk [vmem:[#allocation3] sm:$0x1] %vm258, %v253
    // Predicated region
    $region30: #{critic_forward.1} parent=1 // pred_check
      _
    $region31: #{critic_forward.1} parent=1 // pred_check_branch
      %261 = sbr.rel (0) target = $region33
    $region32: #{critic_forward.1} parent=1 // pred_region
      %s263 = ssub.s32 16, 16
      %264 = vsyncadd [#allocation4], %s263
      %s266 = sshll.u32 [#allocation3], 4
      %s267 = int_to_ptr.vmem [resolvable:$true] %s266
      %269 = dma.vmem_to_hbm [thread:$0]  %s267, 16, %s7, [#allocation4]
    $region33: #{critic_forward.1} parent=1 // pred_fallthru
      _
    // Predicated region
    $region34: #{critic_forward.1} parent=1 // pred_check
      _
    $region35: #{critic_forward.1} parent=1 // pred_check_branch
      %271 = sbr.rel (0) target = $region37
    $region36: #{critic_forward.1} parent=1 // pred_region
      %272 = dma.done [#allocation4], 16
    $region37: #{critic_forward.1} parent=1 // pred_fallthru
      _
    %273 = vsyncpa [#allocation4], 1

</llo_original>
